<compile_context>
chip_gen: v5e
topology: v5e:2x2
jax: 0.10.0
libtpu: 0.0.40
codegen_flags: <defaults>
</compile_context>

<pallas_src>
import jax
import jax.numpy as jnp
from jax.experimental import pallas as pl
from jax.experimental.pallas import tpu as pltpu


def _hbm_copy_kernel(x_hbm, o_hbm, sem):
    # Identity copy realized as one direct HBM->HBM DMA.  The squeeze itself
    # is a pure metadata change done in the wrapper; this kernel exists only
    # to produce a freshly materialized output buffer at HBM roofline speed.
    cp = pltpu.make_async_copy(x_hbm, o_hbm, sem)
    cp.start()
    cp.wait()


def _materialized_copy(x: jax.Array) -> jax.Array:
    """Copy `x` into a fresh buffer via a single HBM->HBM DMA (no VMEM staging)."""
    nbytes = x.size * jnp.dtype(x.dtype).itemsize
    return pl.pallas_call(
        _hbm_copy_kernel,
        out_shape=jax.ShapeDtypeStruct(x.shape, x.dtype),
        in_specs=[pl.BlockSpec(memory_space=pl.ANY)],
        out_specs=pl.BlockSpec(memory_space=pl.ANY),
        scratch_shapes=[pltpu.SemaphoreType.DMA],
        cost_estimate=pl.CostEstimate(
            flops=0, transcendentals=0, bytes_accessed=2 * nbytes),
    )(x)


def squeeze_dim(x: jax.Array, dim: int = -1,
                force_materialize: bool = False) -> jax.Array:
    """Pallas/JAX implementation of SqueezeDim.forward.

    Default: metadata-only (no kernel, no HBM copy) — matches PyTorch cost.
    force_materialize=True: produce a fresh buffer via one HBM->HBM DMA.
    """
    ndim = x.ndim
    if ndim == 0:
        return x
    d = dim % ndim

    if x.shape[d] != 1:
        # PyTorch: squeeze(dim) with size != 1 is a no-op — return untouched.
        return x

    out_shape = x.shape[:d] + x.shape[d + 1:]
    y = x.reshape(out_shape)  # metadata-only squeeze (zero data movement)

    if not force_materialize or y.ndim == 0:
        # TODO(synk): 0-d outputs skip the DMA path (not worth a kernel).
        return y

    return _materialized_copy(y)


if __name__ == "__main__":
    key = jax.random.PRNGKey(0)

    # Module default: dim = -1. Input carries a trailing singleton dim:
    # (batch=2, channels=4, spatial=16, 1) -> (2, 4, 16).
    x = jax.random.normal(key, (2, 4, 16, 1), dtype=jnp.float32)
    ref = jnp.squeeze(x, axis=-1)

    # 1) Default fast path: metadata-only squeeze (no kernel launched).
    y = jax.block_until_ready(squeeze_dim(x, dim=-1))
    assert y.shape == (2, 4, 16), y.shape
    assert y.dtype == x.dtype
    assert bool(jnp.all(y == ref))

    # 2) Materialized path: exercises the single HBM->HBM DMA kernel.
    y_k = jax.block_until_ready(squeeze_dim(x, dim=-1, force_materialize=True))
    assert y_k.shape == (2, 4, 16), y_k.shape
    assert y_k.dtype == x.dtype
    assert bool(jnp.all(y_k == ref))

    # 3) Materialized path with a non-trailing dim and a different dtype
    #    (bf16: no sublane/tiling concerns on the DMA path).
    xb = jax.random.normal(jax.random.PRNGKey(2), (2, 1, 16, 8),
                           dtype=jnp.bfloat16)
    yb = jax.block_until_ready(squeeze_dim(xb, dim=1, force_materialize=True))
    assert yb.shape == (2, 16, 8), yb.shape
    assert bool(jnp.all(yb == jnp.squeeze(xb, axis=1)))

    # 4) PyTorch no-op case (size != 1 at dim): returned untouched, no copy.
    x2 = jax.random.normal(jax.random.PRNGKey(1), (2, 4, 16), dtype=jnp.float32)
    y2 = jax.block_until_ready(squeeze_dim(x2, dim=-1))
    assert y2.shape == x2.shape
    assert bool(jnp.all(y2 == x2))

    print("KERNEL_OK")
</pallas_src>

<mosaic_0001>
module attributes {stable_mosaic.version = 11 : i64} {
  func.func @_hbm_copy_kernel(%arg0: memref<2x4x16xf32, #tpu.memory_space<any>>, %arg1: memref<2x4x16xf32, #tpu.memory_space<any>>, %arg2: memref<!tpu.dma_semaphore, #tpu.memory_space<semaphore_mem>>) attributes {dimension_semantics = [], scalar_prefetch = 0 : i64, scratch_operands = 1 : i64, tpu.core_type = #tpu.core_type<tc>} {
    tpu.enqueue_dma source(%arg0 : memref<2x4x16xf32, #tpu.memory_space<any>>) target(%arg1 : memref<2x4x16xf32, #tpu.memory_space<any>>) target_semaphore(%arg2 : memref<!tpu.dma_semaphore, #tpu.memory_space<semaphore_mem>>)
    tpu.wait_dma2 semaphore(%arg2 : memref<!tpu.dma_semaphore, #tpu.memory_space<semaphore_mem>>) src(%arg0 : memref<2x4x16xf32, #tpu.memory_space<any>>) dst(%arg1 : memref<2x4x16xf32, #tpu.memory_space<any>>)
    return
  }
}

</mosaic_0001>

<llo_original>
// kernel: tpu_custom_call.1
$region0: #{tpu_custom_call.1}
  #allocation0 [shape = 'u32[]', space=smem, size = 0x4, offset = 0x4, fixed_abs, tag = 'smem constant byte address 0x4 - core index']
  #allocation1 [shape = 'u32[72,128]{1,0:T(1,128)}', space=vmem, size = 0x9000, scoped, tag = 'internal scratch']
  #allocation2 [shape = 's32[1]{0}', space=sflag, size = 0x4, scoped, tag = 'scratch operand']
  #allocation3 [shape = 's32[]', space=sflag, size = 0x4, offset = 0, fixed_abs, tag = 'sflag constant byte address 0x0 - dummy sync flag']
  #allocation4 [shape = 'u32[0]{0}', space=smem, size = 0, offset = 0, fixed_abs, tag = 'smem constant byte address 0x0 - null']
  %s0 = inlined_call_operand.hbm [shape: f32[2,4,16], index: 0, kind: input, shape index: {}]
  %s1 = inlined_call_operand.hbm [shape: f32[2,4,16], index: 1, kind: output, shape index: {}]
  %s2 = sld [smem:[#allocation0]]
  $region2: #{tpu_custom_call.1} parent=0
    _
  %s4 = ssub.s32 1, %s2
  %s5 = scalar_select 0, %s4, %s2
  %s7 = sshll.u32 1, 14
  %s8 = sxor.u32 4294967295, %s7
  %s10 = sshll.u32 %s0, 4
  %s11 = int_to_ptr.hbm [resolvable:$true] %s10
  %s12 = sshll.u32 %s1, 4
  %s13 = int_to_ptr.hbm [resolvable:$true] %s12
  %16 = dma.general %s11, 128, %s13, [#allocation2], [#allocation3], [#allocation4], 0, 0
  %s17 = smul.u32 2, 4
  %s18 = smul.u32 %s17, 1
  %s19 = sshll.u32 %s18, 4
  %20 = dma.done [#allocation2], %s19
  %21 = vsyncmov [#allocation2]
  %s22 = vpop.sfrf %21
  %p23 = scmp.eq.s32.totalorder %s22, 0
  %p24 = pneg %p23
  %26 = shalt.err (%p24)

</llo_original>
